<compile_context>
chip_gen: v7x
topology: tpu7x:2x2x1
jax: 0.10.0
libtpu: 0.0.40
codegen_flags: <defaults>
</compile_context>

<pallas_src>
import jax
import jax.numpy as jnp
import numpy as np
from jax import lax
from jax.experimental import pallas as pl
from jax.experimental.pallas import tpu as pltpu


def _self_attn_kernel(x_q_ref, x_kv_ref, wq_ref, bq_ref, wk_ref, bk_ref,
                      wv_ref, bv_ref, g_ref, o_ref,
                      q_s, m_s, l_s, acc_s):
    # x_q_ref : (1, C, tq)   columns of x for this query tile (resident over kv)
    # x_kv_ref: (1, C, tkv)  columns of x for this key/value tile
    ki = pl.program_id(2)
    nk = pl.num_programs(2)

    @pl.when(ki == 0)
    def _init():
        # Project the query tile once per (b, qi); cache it in VMEM scratch.
        x_q = x_q_ref[0]                                              # (C, tq)
        q_s[...] = (jnp.dot(wq_ref[...], x_q,
                            preferred_element_type=jnp.float32)
                    + bq_ref[...])                                    # (Cq, tq)
        m_s[...] = jnp.full_like(m_s, -jnp.inf)
        l_s[...] = jnp.zeros_like(l_s)
        acc_s[...] = jnp.zeros_like(acc_s)

    x_kv = x_kv_ref[0]                                                # (C, tkv)
    k = (jnp.dot(wk_ref[...], x_kv, preferred_element_type=jnp.float32)
         + bk_ref[...])                                               # (Cq, tkv)
    v = (jnp.dot(wv_ref[...], x_kv, preferred_element_type=jnp.float32)
         + bv_ref[...])                                               # (C, tkv)

    # s[j, i] = energy[i, j] = sum_c q[c, i] * k[c, j]   (no explicit .T)
    s = lax.dot_general(k, q_s[...], (((0,), (0,)), ((), ())),
                        preferred_element_type=jnp.float32)           # (tkv, tq)

    # Online softmax over j (axis 0 of s) — per-query stats live on lanes.
    m_prev = m_s[...]                                                 # (1, tq)
    m_new = jnp.maximum(m_prev, jnp.max(s, axis=0, keepdims=True))    # (1, tq)
    alpha = jnp.exp(m_prev - m_new)                                   # (1, tq)
    p = jnp.exp(s - m_new)                                            # (tkv, tq)

    l_s[...] = alpha * l_s[...] + jnp.sum(p, axis=0, keepdims=True)
    # Deep-contraction matmul (K = tkv): bf16 operands, f32 accumulation.
    acc_s[...] = alpha * acc_s[...] + jnp.dot(
        v.astype(jnp.bfloat16), p.astype(jnp.bfloat16),
        preferred_element_type=jnp.float32)                           # (C, tq)
    m_s[...] = m_new

    @pl.when(ki == nk - 1)
    def _finalize():
        # gamma folded into the per-query reciprocal (one multiply, not two).
        scale = g_ref[0, 0] * pl.reciprocal(l_s[...], approx=True)    # (1, tq)
        o_ref[0] = (acc_s[...] * scale).astype(o_ref.dtype)           # (C, tq)


def _pick_tile(n, target):
    """Largest tile <= target that divides n; keeps the lane dim a multiple
    of 128 (or the full extent when n itself is small / unaligned)."""
    if n <= target or n % 128 != 0:
        return n
    t = (target // 128) * 128
    while n % t != 0:
        t -= 128
    return t


def self_attn_pallas(x_nchw, wq, bq, wk, bk, wv, bv, gamma, *, tq=None, tkv=None):
    """x_nchw: (B, C, W, H) f32.  wq/wk: (Cq, C), wv: (C, C), biases 1-D, gamma (1,)."""
    B, C, W, H = x_nchw.shape
    N = W * H
    Cq = wq.shape[0]

    # NCHW -> (B, C, N): pure reshape, channels on sublanes, spatial on lanes.
    x_cn = x_nchw.reshape(B, C, N)

    # Tile sizes: defaults sized for the tightest VMEM budget (v7x: 64 MiB
    # physical / 32 MiB default scoped); also fine on v5e/v6e.
    if tq is None:
        tq = _pick_tile(N, 256)
    if tkv is None:
        tkv = _pick_tile(N, 512)
    assert N % tq == 0 and N % tkv == 0
    nq, nkv = N // tq, N // tkv

    wq_f = wq.astype(jnp.float32)
    wk_f = wk.astype(jnp.float32)
    wv_f = wv.astype(jnp.float32)
    bq2 = bq.reshape(Cq, 1).astype(jnp.float32)
    bk2 = bk.reshape(Cq, 1).astype(jnp.float32)
    bv2 = bv.reshape(C, 1).astype(jnp.float32)
    g2 = gamma.reshape(1, 1).astype(jnp.float32)

    out_cn = pl.pallas_call(
        _self_attn_kernel,
        out_shape=jax.ShapeDtypeStruct((B, C, N), x_cn.dtype),
        grid_spec=pltpu.PrefetchScalarGridSpec(
            num_scalar_prefetch=0,
            grid=(B, nq, nkv),
            in_specs=[
                pl.BlockSpec((1, C, tq), lambda b, qi, ki: (b, 0, qi)),    # x (q cols)
                pl.BlockSpec((1, C, tkv), lambda b, qi, ki: (b, 0, ki)),   # x (kv cols)
                pl.BlockSpec((Cq, C), lambda b, qi, ki: (0, 0)),           # Wq
                pl.BlockSpec((Cq, 1), lambda b, qi, ki: (0, 0)),           # bq
                pl.BlockSpec((Cq, C), lambda b, qi, ki: (0, 0)),           # Wk
                pl.BlockSpec((Cq, 1), lambda b, qi, ki: (0, 0)),           # bk
                pl.BlockSpec((C, C), lambda b, qi, ki: (0, 0)),            # Wv
                pl.BlockSpec((C, 1), lambda b, qi, ki: (0, 0)),            # bv
                pl.BlockSpec(memory_space=pltpu.MemorySpace.SMEM),         # gamma (scalar path)
            ],
            out_specs=pl.BlockSpec((1, C, tq), lambda b, qi, ki: (b, 0, qi)),
            scratch_shapes=[
                pltpu.VMEM((Cq, tq), jnp.float32),   # q tile
                pltpu.VMEM((1, tq), jnp.float32),    # running max
                pltpu.VMEM((1, tq), jnp.float32),    # running sum
                pltpu.VMEM((C, tq), jnp.float32),    # output accumulator
            ],
        ),
        compiler_params=pltpu.CompilerParams(
            dimension_semantics=("parallel", "parallel", "arbitrary")),
    )(x_cn, x_cn, wq_f, bq2, wk_f, bk2, wv_f, bv2, g2)

    # (B, C, N) -> NCHW: pure reshape, no transpose.
    return out_cn.reshape(B, C, W, H)


def self_attn_reference(x_nchw, wq, bq, wk, bk, wv, bv, gamma):
    """Pure-JAX reference matching the PyTorch forward exactly (f32)."""
    B, C, W, H = x_nchw.shape
    N = W * H
    x_flat = x_nchw.reshape(B, C, N)                                   # (B, C, N)
    q = jnp.einsum('oc,bcn->bon', wq, x_flat) + bq[None, :, None]      # (B, Cq, N)
    k = jnp.einsum('oc,bcn->bon', wk, x_flat) + bk[None, :, None]      # (B, Cq, N)
    v = jnp.einsum('oc,bcn->bon', wv, x_flat) + bv[None, :, None]      # (B, C, N)
    energy = jnp.einsum('bci,bcj->bij', q, k)                          # (B, N, N)
    attn = jax.nn.softmax(energy, axis=-1)
    out = jnp.einsum('bcj,bij->bci', v, attn)                          # (B, C, N)
    return (gamma[0] * out).reshape(B, C, W, H)


if __name__ == "__main__":
    # Small shapes consistent with the module: in_dim must be >= 8 (C // 8 >= 1).
    B, C, W, H = 2, 16, 16, 16
    Cq = C // 8

    key = jax.random.PRNGKey(0)
    ks = jax.random.split(key, 8)
    x = jax.random.normal(ks[0], (B, C, W, H), dtype=jnp.float32)

    wq = jax.random.normal(ks[1], (Cq, C), dtype=jnp.float32) * 0.2
    bq = jax.random.normal(ks[2], (Cq,), dtype=jnp.float32) * 0.05
    wk = jax.random.normal(ks[3], (Cq, C), dtype=jnp.float32) * 0.2
    bk = jax.random.normal(ks[4], (Cq,), dtype=jnp.float32) * 0.05
    wv = jax.random.normal(ks[5], (C, C), dtype=jnp.float32) * 0.2
    bv = jax.random.normal(ks[6], (C,), dtype=jnp.float32) * 0.05
    gamma = jnp.array([0.75], dtype=jnp.float32)   # learnable scalar (init is ones(1))

    # Use tq=tkv=128 here so N=256 exercises the multi-tile online-softmax path
    # (grid = (2, 2, 2)); defaults (256/512) are used for production sizes.
    out = self_attn_pallas(x, wq, bq, wk, bk, wv, bv, gamma, tq=128, tkv=128)
    out = jax.block_until_ready(out)

    ref = self_attn_reference(x, wq, bq, wk, bk, wv, bv, gamma)
    # Tolerance accounts for bf16 operands in the attn@v matmul and the
    # approximate (EUP) reciprocal used for the softmax normalization.
    np.testing.assert_allclose(np.asarray(out), np.asarray(ref), rtol=1e-2, atol=3e-3)

    print("KERNEL_OK")
</pallas_src>

<mosaic_0001>
module attributes {stable_mosaic.version = 11 : i64} {
  func.func @_self_attn_kernel(%arg0: i32, %arg1: i32, %arg2: i32, %arg3: memref<1x16x128xf32, #tpu.memory_space<vmem>>, %arg4: memref<1x16x128xf32, #tpu.memory_space<vmem>>, %arg5: memref<2x16xf32, #tpu.memory_space<vmem>>, %arg6: memref<2x1xf32, #tpu.memory_space<vmem>>, %arg7: memref<2x16xf32, #tpu.memory_space<vmem>>, %arg8: memref<2x1xf32, #tpu.memory_space<vmem>>, %arg9: memref<16x16xf32, #tpu.memory_space<vmem>>, %arg10: memref<16x1xf32, #tpu.memory_space<vmem>>, %arg11: memref<1x1xf32, #tpu.memory_space<smem>>, %arg12: memref<1x16x128xf32, #tpu.memory_space<vmem>>, %arg13: memref<2x128xf32, #tpu.memory_space<vmem>>, %arg14: memref<1x128xf32, #tpu.memory_space<vmem>>, %arg15: memref<1x128xf32, #tpu.memory_space<vmem>>, %arg16: memref<16x128xf32, #tpu.memory_space<vmem>>) attributes {dimension_semantics = [#tpu.dimension_semantics<parallel>, #tpu.dimension_semantics<parallel>, #tpu.dimension_semantics<arbitrary>], iteration_bounds = array<i64: 2, 2, 2>, scalar_prefetch = 0 : i64, scratch_operands = 4 : i64, tpu.core_type = #tpu.core_type<tc>, window_params = [{transform_indices = @transform_0, window_bounds = array<i64: 1, 16, 128>}, {transform_indices = @transform_1, window_bounds = array<i64: 1, 16, 128>}, {pipeline_mode = #tpu.pipeline_mode<synchronous>, transform_indices = @transform_2, window_bounds = array<i64: 2, 16>}, {pipeline_mode = #tpu.pipeline_mode<synchronous>, transform_indices = @transform_3, window_bounds = array<i64: 2, 1>}, {pipeline_mode = #tpu.pipeline_mode<synchronous>, transform_indices = @transform_4, window_bounds = array<i64: 2, 16>}, {pipeline_mode = #tpu.pipeline_mode<synchronous>, transform_indices = @transform_5, window_bounds = array<i64: 2, 1>}, {pipeline_mode = #tpu.pipeline_mode<synchronous>, transform_indices = @transform_6, window_bounds = array<i64: 16, 16>}, {pipeline_mode = #tpu.pipeline_mode<synchronous>, transform_indices = @transform_7, window_bounds = array<i64: 16, 1>}, {transform_indices = @transform_8, window_bounds = array<i64: 1, 1>}, {transform_indices = @transform_9, window_bounds = array<i64: 1, 16, 128>}]} {
    %c0_i32 = arith.constant 0 : i32
    %0 = arith.cmpi eq, %arg2, %c0_i32 : i32
    %1 = arith.extui %0 : i1 to i32
    %c0_i32_0 = arith.constant 0 : i32
    %2 = arith.cmpi ne, %1, %c0_i32_0 : i32
    scf.if %2 {
      %c0_31 = arith.constant 0 : index
      %c0_32 = arith.constant 0 : index
      %c0_33 = arith.constant 0 : index
      %44 = vector.load %arg3[%c0_31, %c0_32, %c0_33] : memref<1x16x128xf32, #tpu.memory_space<vmem>>, vector<1x16x128xf32>
      %45 = vector.shape_cast %44 : vector<1x16x128xf32> to vector<16x128xf32>
      %c0_34 = arith.constant 0 : index
      %c0_35 = arith.constant 0 : index
      %46 = vector.load %arg5[%c0_34, %c0_35] : memref<2x16xf32, #tpu.memory_space<vmem>>, vector<2x16xf32>
      %cst_36 = arith.constant dense<0.000000e+00> : vector<2x128xf32>
      %47 = tpu.matmul %46, %45, %cst_36 {dimension_numbers = #tpu.dot_dimension_numbers<[1], [0], [0], [1], [0, 0, 1, 1], [], []>} : vector<2x16xf32>, vector<16x128xf32>, vector<2x128xf32> -> vector<2x128xf32>
      %c0_37 = arith.constant 0 : index
      %c0_38 = arith.constant 0 : index
      %48 = vector.load %arg6[%c0_37, %c0_38] : memref<2x1xf32, #tpu.memory_space<vmem>>, vector<2x1xf32>
      %49 = vector.broadcast %48 : vector<2x1xf32> to vector<2x128xf32>
      %50 = arith.addf %47, %49 : vector<2x128xf32>
      %c0_39 = arith.constant 0 : index
      %c0_40 = arith.constant 0 : index
      %51 = vector.load %arg13[%c0_39, %c0_40] : memref<2x128xf32, #tpu.memory_space<vmem>>, vector<2x128xf32>
      tpu.vector_store %arg13[%c0_39, %c0_40], %50 {strides = array<i32>} : memref<2x128xf32, #tpu.memory_space<vmem>>, vector<2x128xf32>,
      %cst_41 = arith.constant 0xFF800000 : f32
      %52 = vector.broadcast %cst_41 : f32 to vector<1x128xf32>
      %c0_42 = arith.constant 0 : index
      %c0_43 = arith.constant 0 : index
      %53 = vector.load %arg14[%c0_42, %c0_43] : memref<1x128xf32, #tpu.memory_space<vmem>>, vector<1x128xf32>
      tpu.vector_store %arg14[%c0_42, %c0_43], %52 {strides = array<i32>} : memref<1x128xf32, #tpu.memory_space<vmem>>, vector<1x128xf32>,
      %cst_44 = arith.constant 0.000000e+00 : f32
      %54 = vector.broadcast %cst_44 : f32 to vector<1x128xf32>
      %c0_45 = arith.constant 0 : index
      %c0_46 = arith.constant 0 : index
      %55 = vector.load %arg15[%c0_45, %c0_46] : memref<1x128xf32, #tpu.memory_space<vmem>>, vector<1x128xf32>
      tpu.vector_store %arg15[%c0_45, %c0_46], %54 {strides = array<i32>} : memref<1x128xf32, #tpu.memory_space<vmem>>, vector<1x128xf32>,
      %cst_47 = arith.constant 0.000000e+00 : f32
      %56 = vector.broadcast %cst_47 : f32 to vector<16x128xf32>
      %c0_48 = arith.constant 0 : index
      %c0_49 = arith.constant 0 : index
      %57 = vector.load %arg16[%c0_48, %c0_49] : memref<16x128xf32, #tpu.memory_space<vmem>>, vector<16x128xf32>
      tpu.vector_store %arg16[%c0_48, %c0_49], %56 {strides = array<i32>} : memref<16x128xf32, #tpu.memory_space<vmem>>, vector<16x128xf32>,
    } else {
    }
    %c0 = arith.constant 0 : index
    %c0_1 = arith.constant 0 : index
    %c0_2 = arith.constant 0 : index
    %3 = vector.load %arg4[%c0, %c0_1, %c0_2] : memref<1x16x128xf32, #tpu.memory_space<vmem>>, vector<1x16x128xf32>
    %4 = vector.shape_cast %3 : vector<1x16x128xf32> to vector<16x128xf32>
    %c0_3 = arith.constant 0 : index
    %c0_4 = arith.constant 0 : index
    %5 = vector.load %arg7[%c0_3, %c0_4] : memref<2x16xf32, #tpu.memory_space<vmem>>, vector<2x16xf32>
    %cst = arith.constant dense<0.000000e+00> : vector<2x128xf32>
    %6 = tpu.matmul %5, %4, %cst {dimension_numbers = #tpu.dot_dimension_numbers<[1], [0], [0], [1], [0, 0, 1, 1], [], []>} : vector<2x16xf32>, vector<16x128xf32>, vector<2x128xf32> -> vector<2x128xf32>
    %c0_5 = arith.constant 0 : index
    %c0_6 = arith.constant 0 : index
    %7 = vector.load %arg8[%c0_5, %c0_6] : memref<2x1xf32, #tpu.memory_space<vmem>>, vector<2x1xf32>
    %8 = vector.broadcast %7 : vector<2x1xf32> to vector<2x128xf32>
    %9 = arith.addf %6, %8 : vector<2x128xf32>
    %c0_7 = arith.constant 0 : index
    %c0_8 = arith.constant 0 : index
    %10 = vector.load %arg9[%c0_7, %c0_8] : memref<16x16xf32, #tpu.memory_space<vmem>>, vector<16x16xf32>
    %cst_9 = arith.constant dense<0.000000e+00> : vector<16x128xf32>
    %11 = tpu.matmul %10, %4, %cst_9 {dimension_numbers = #tpu.dot_dimension_numbers<[1], [0], [0], [1], [0, 0, 1, 1], [], []>} : vector<16x16xf32>, vector<16x128xf32>, vector<16x128xf32> -> vector<16x128xf32>
    %c0_10 = arith.constant 0 : index
    %c0_11 = arith.constant 0 : index
    %12 = vector.load %arg10[%c0_10, %c0_11] : memref<16x1xf32, #tpu.memory_space<vmem>>, vector<16x1xf32>
    %13 = vector.broadcast %12 : vector<16x1xf32> to vector<16x128xf32>
    %14 = arith.addf %11, %13 : vector<16x128xf32>
    %c0_12 = arith.constant 0 : index
    %c0_13 = arith.constant 0 : index
    %15 = vector.load %arg13[%c0_12, %c0_13] : memref<2x128xf32, #tpu.memory_space<vmem>>, vector<2x128xf32>
    %cst_14 = arith.constant dense<0.000000e+00> : vector<128x128xf32>
    %16 = tpu.matmul %9, %15, %cst_14 {dimension_numbers = #tpu.dot_dimension_numbers<[0], [0], [1], [1], [0, 1, 1, 1], [], []>} : vector<2x128xf32>, vector<2x128xf32>, vector<128x128xf32> -> vector<128x128xf32>
    %c0_15 = arith.constant 0 : index
    %c0_16 = arith.constant 0 : index
    %17 = vector.load %arg14[%c0_15, %c0_16] : memref<1x128xf32, #tpu.memory_space<vmem>>, vector<1x128xf32>
    %cst_17 = arith.constant dense<0xFF800000> : vector<128xf32>
    %18 = vector.multi_reduction <maximumf>, %16, %cst_17 [0] : vector<128x128xf32> to vector<128xf32>
    %19 = vector.shape_cast %18 : vector<128xf32> to vector<1x128xf32>
    %20 = arith.maximumf %17, %19 : vector<1x128xf32>
    %21 = arith.subf %17, %20 : vector<1x128xf32>
    %22 = math.exp %21 : vector<1x128xf32>
    %23 = vector.broadcast %20 : vector<1x128xf32> to vector<128x128xf32>
    %24 = arith.subf %16, %23 : vector<128x128xf32>
    %25 = math.exp %24 : vector<128x128xf32>
    %c0_18 = arith.constant 0 : index
    %c0_19 = arith.constant 0 : index
    %26 = vector.load %arg15[%c0_18, %c0_19] : memref<1x128xf32, #tpu.memory_space<vmem>>, vector<1x128xf32>
    %27 = arith.mulf %22, %26 : vector<1x128xf32>
    %cst_20 = arith.constant dense<0.000000e+00> : vector<128xf32>
    %28 = vector.multi_reduction <add>, %25, %cst_20 [0] : vector<128x128xf32> to vector<128xf32>
    %29 = vector.shape_cast %28 : vector<128xf32> to vector<1x128xf32>
    %30 = arith.addf %27, %29 : vector<1x128xf32>
    %c0_21 = arith.constant 0 : index
    %c0_22 = arith.constant 0 : index
    %31 = vector.load %arg15[%c0_21, %c0_22] : memref<1x128xf32, #tpu.memory_space<vmem>>, vector<1x128xf32>
    tpu.vector_store %arg15[%c0_21, %c0_22], %30 {strides = array<i32>} : memref<1x128xf32, #tpu.memory_space<vmem>>, vector<1x128xf32>,
    %c0_23 = arith.constant 0 : index
    %c0_24 = arith.constant 0 : index
    %32 = vector.load %arg16[%c0_23, %c0_24] : memref<16x128xf32, #tpu.memory_space<vmem>>, vector<16x128xf32>
    %33 = vector.broadcast %22 : vector<1x128xf32> to vector<16x128xf32>
    %34 = arith.mulf %33, %32 : vector<16x128xf32>
    %35 = arith.truncf %14 : vector<16x128xf32> to vector<16x128xbf16>
    %36 = arith.truncf %25 : vector<128x128xf32> to vector<128x128xbf16>
    %cst_25 = arith.constant dense<0.000000e+00> : vector<16x128xf32>
    %37 = tpu.matmul %35, %36, %cst_25 {dimension_numbers = #tpu.dot_dimension_numbers<[1], [0], [0], [1], [0, 0, 1, 1], [], []>} : vector<16x128xbf16>, vector<128x128xbf16>, vector<16x128xf32> -> vector<16x128xf32>
    %38 = arith.addf %34, %37 : vector<16x128xf32>
    %c0_26 = arith.constant 0 : index
    %c0_27 = arith.constant 0 : index
    %39 = vector.load %arg16[%c0_26, %c0_27] : memref<16x128xf32, #tpu.memory_space<vmem>>, vector<16x128xf32>
    tpu.vector_store %arg16[%c0_26, %c0_27], %38 {strides = array<i32>} : memref<16x128xf32, #tpu.memory_space<vmem>>, vector<16x128xf32>,
    %c0_28 = arith.constant 0 : index
    %c0_29 = arith.constant 0 : index
    %40 = vector.load %arg14[%c0_28, %c0_29] : memref<1x128xf32, #tpu.memory_space<vmem>>, vector<1x128xf32>
    tpu.vector_store %arg14[%c0_28, %c0_29], %20 {strides = array<i32>} : memref<1x128xf32, #tpu.memory_space<vmem>>, vector<1x128xf32>,
    %c1_i32 = arith.constant 1 : i32
    %41 = arith.cmpi eq, %arg2, %c1_i32 : i32
    %42 = arith.extui %41 : i1 to i32
    %c0_i32_30 = arith.constant 0 : i32
    %43 = arith.cmpi ne, %42, %c0_i32_30 : i32
    scf.if %43 {
      %c0_31 = arith.constant 0 : index
      %c0_32 = arith.constant 0 : index
      %44 = memref.load %arg11[%c0_31, %c0_32] : memref<1x1xf32, #tpu.memory_space<smem>>
      %c0_33 = arith.constant 0 : index
      %c0_34 = arith.constant 0 : index
      %45 = vector.load %arg15[%c0_33, %c0_34] : memref<1x128xf32, #tpu.memory_space<vmem>>, vector<1x128xf32>
      %46 = tpu.reciprocal %45 {approx = true} : vector<1x128xf32> -> vector<1x128xf32>
      %47 = vector.broadcast %44 : f32 to vector<1x128xf32>
      %48 = arith.mulf %47, %46 : vector<1x128xf32>
      %c0_35 = arith.constant 0 : index
      %c0_36 = arith.constant 0 : index
      %49 = vector.load %arg16[%c0_35, %c0_36] : memref<16x128xf32, #tpu.memory_space<vmem>>, vector<16x128xf32>
      %50 = vector.broadcast %48 : vector<1x128xf32> to vector<16x128xf32>
      %51 = arith.mulf %49, %50 : vector<16x128xf32>
      %c0_37 = arith.constant 0 : index
      %c0_38 = arith.constant 0 : index
      %c0_39 = arith.constant 0 : index
      %52 = vector.load %arg12[%c0_37, %c0_38, %c0_39] : memref<1x16x128xf32, #tpu.memory_space<vmem>>, vector<1x16x128xf32>
      %53 = vector.shape_cast %52 : vector<1x16x128xf32> to vector<16x128xf32>
      %54 = vector.shape_cast %51 : vector<16x128xf32> to vector<1x16x128xf32>
      tpu.vector_store %arg12[%c0_37, %c0_38, %c0_39], %54 {strides = array<i32>} : memref<1x16x128xf32, #tpu.memory_space<vmem>>, vector<1x16x128xf32>,
    } else {
    }
    return
  }
  func.func @transform_0(%arg0: i32, %arg1: i32, %arg2: i32) -> (i32, i32, i32) {
    %c0_i32 = arith.constant 0 : i32
    %c0_i32_0 = arith.constant 0 : i32
    return %arg0, %c0_i32, %arg1 : i32, i32, i32
  }
  func.func @transform_1(%arg0: i32, %arg1: i32, %arg2: i32) -> (i32, i32, i32) {
    %c0_i32 = arith.constant 0 : i32
    %c0_i32_0 = arith.constant 0 : i32
    return %arg0, %c0_i32, %arg2 : i32, i32, i32
  }
  func.func @transform_2(%arg0: i32, %arg1: i32, %arg2: i32) -> (i32, i32) {
    %c0_i32 = arith.constant 0 : i32
    %c0_i32_0 = arith.constant 0 : i32
    %c0_i32_1 = arith.constant 0 : i32
    return %c0_i32, %c0_i32_0 : i32, i32
  }
  func.func @transform_3(%arg0: i32, %arg1: i32, %arg2: i32) -> (i32, i32) {
    %c0_i32 = arith.constant 0 : i32
    %c0_i32_0 = arith.constant 0 : i32
    %c0_i32_1 = arith.constant 0 : i32
    return %c0_i32, %c0_i32_0 : i32, i32
  }
  func.func @transform_4(%arg0: i32, %arg1: i32, %arg2: i32) -> (i32, i32) {
    %c0_i32 = arith.constant 0 : i32
    %c0_i32_0 = arith.constant 0 : i32
    %c0_i32_1 = arith.constant 0 : i32
    return %c0_i32, %c0_i32_0 : i32, i32
  }
  func.func @transform_5(%arg0: i32, %arg1: i32, %arg2: i32) -> (i32, i32) {
    %c0_i32 = arith.constant 0 : i32
    %c0_i32_0 = arith.constant 0 : i32
    %c0_i32_1 = arith.constant 0 : i32
    return %c0_i32, %c0_i32_0 : i32, i32
  }
  func.func @transform_6(%arg0: i32, %arg1: i32, %arg2: i32) -> (i32, i32) {
    %c0_i32 = arith.constant 0 : i32
    %c0_i32_0 = arith.constant 0 : i32
    %c0_i32_1 = arith.constant 0 : i32
    return %c0_i32, %c0_i32_0 : i32, i32
  }
  func.func @transform_7(%arg0: i32, %arg1: i32, %arg2: i32) -> (i32, i32) {
    %c0_i32 = arith.constant 0 : i32
    %c0_i32_0 = arith.constant 0 : i32
    %c0_i32_1 = arith.constant 0 : i32
    return %c0_i32, %c0_i32_0 : i32, i32
  }
  func.func @transform_8(%arg0: i32, %arg1: i32, %arg2: i32) -> (i32, i32) {
    %c0_i32 = arith.constant 0 : i32
    %c0_i32_0 = arith.constant 0 : i32
    %c0_i32_1 = arith.constant 0 : i32
    return %c0_i32, %c0_i32_0 : i32, i32
  }
  func.func @transform_9(%arg0: i32, %arg1: i32, %arg2: i32) -> (i32, i32, i32) {
    %c0_i32 = arith.constant 0 : i32
    %c0_i32_0 = arith.constant 0 : i32
    return %arg0, %c0_i32, %arg1 : i32, i32, i32
  }
}

</mosaic_0001>

<llo_original>
// kernel: tpu_custom_call.1
$region0: #{tpu_custom_call.1}
  #allocation0 [shape = 'u32[]', space=smem, size = 0x4, offset = 0x4, fixed_abs, tag = 'smem constant byte address 0x4 - core index']
  #allocation1 [shape = 'u32[144,128]{1,0:T(1,128)}', space=vmem, size = 0x12000, scoped, tag = 'internal scratch']
  #allocation2 [shape = 'f32[2,128]{1,0:T(2,128)}', space=vmem, size = 0x400, scoped, tag = 'scratch operand']
  #allocation3 [shape = 'f32[1,128]{1,0:T(1,128)}', space=vmem, size = 0x200, scoped, tag = 'scratch operand']
  #allocation4 [shape = 'f32[1,128]{1,0:T(1,128)}', space=vmem, size = 0x200, scoped, tag = 'scratch operand']
  #allocation5 [shape = 'f32[16,128]{1,0:T(8,128)}', space=vmem, size = 0x2000, scoped, tag = 'scratch operand']
  #allocation6 [shape = 'f32[1,1]{1,0:T(1,128)S(6)}', space=smem, size = 0x200, scoped, tag = 'scoped memory for tpu_custom_call.1']
  %s0 = inlined_call_operand.hbm [shape: f32[2,16,256], index: 0, kind: input, shape index: {}]
  %s1 = inlined_call_operand.hbm [shape: f32[2,16,256], index: 1, kind: input, shape index: {}]
  %s2 = inlined_call_operand.vmem [shape: f32[2,16], index: 2, kind: input, shape index: {}]
  %s3 = inlined_call_operand.vmem [shape: f32[2,1], index: 3, kind: input, shape index: {}]
  %s4 = inlined_call_operand.vmem [shape: f32[2,16], index: 4, kind: input, shape index: {}]
  %s5 = inlined_call_operand.vmem [shape: f32[2,1], index: 5, kind: input, shape index: {}]
  %s6 = inlined_call_operand.vmem [shape: f32[16,16], index: 6, kind: input, shape index: {}]
  %s7 = inlined_call_operand.vmem [shape: f32[16,1], index: 7, kind: input, shape index: {}]
  %s8 = inlined_call_operand.<no memory space> [shape: f32[1,1], index: 8, kind: input, shape index: {}]
  %s9 = inlined_call_operand.hbm [shape: f32[2,16,256], index: 9, kind: output, shape index: {}]
  %s10 = sld [smem:[#allocation0]]
  $region85: #{tpu_custom_call.1} parent=0
    _
  %s12 = ssub.s32 1, %s10
  %s13 = scalar_select 0, %s12, %s10
  %14 = sst [smem:[#allocation6]] %s8
  $region1: #{tpu_custom_call.1} parent=0
    #allocation7 [shape = 'u8[16384]{0}', space=vmem, size = 0x4000, scoped, tag = 'input window, operand 0']
    #allocation8 [shape = 's32[2]{0}', space=sflag, size = 0x8, scoped, tag = 'scoped memory for tpu_custom_call.1']
    #allocation9 [shape = 's32[2]{0}', space=sflag, size = 0x8, scoped, tag = 'scoped memory for tpu_custom_call.1']
    #allocation10 [shape = 'u8[16384]{0}', space=vmem, size = 0x4000, scoped, tag = 'input window, operand 1']
    #allocation11 [shape = 's32[2]{0}', space=sflag, size = 0x8, scoped, tag = 'scoped memory for tpu_custom_call.1']
    #allocation12 [shape = 'u8[16384]{0}', space=vmem, size = 0x4000, scoped, tag = 'output window, operand 0']
    %15 = vsyncpa [#allocation8], 0
    %s16 = scalar_lea.sflag [#allocation8], 1
    %17 = vsyncpa %s16, 0
    %18 = vsyncpa [#allocation11], 0
    %s19 = scalar_lea.sflag [#allocation11], 1
    %20 = vsyncpa %s19, 0
    %21 = vsyncpa [#allocation9], 0
    %s22 = scalar_lea.sflag [#allocation9], 1
    %23 = vsyncpa %s22, 0
    loop: start=0, step=1, limit=10
    $region2: #{tpu_custom_call.1} parent=1 // loop_pre_header
      _
    $region3: #{tpu_custom_call.1} parent=1 // loop_header
      %s25 = sphi 0, %s29
      %p26 = scmp.ge.s32.totalorder %s25, 10
      %s32 = sphi 0, %s51
      %s33 = sphi 0, %s47
      %s34 = sphi 0, %s43
      %s35 = sphi 0, %s32
      %s36 = sphi 0, %s33
      %s37 = sphi 0, %s34
      %s38 = sphi 0, %s35
      %s39 = sphi 0, %s36
      %s40 = sphi 0, %s37
      %s56 = sphi 0, %s58
      %s59 = sphi 0, %s56
      %s60 = sphi 0, %s59
      %s76 = sphi 0, %s60
      %s84 = sphi 0, %s86
      %s87 = sphi 0, %s84
      %s88 = sphi 0, %s87
      %s104 = sphi 0, %s88
      %s108 = sphi 0, %s108
      %s110 = sphi 0, %s108
      %s111 = sphi 0, %s110
      %s125 = sphi 0, %s111
      %s129 = sphi 0, %s129
      %s131 = sphi 0, %s129
      %s132 = sphi 0, %s131
      %s146 = sphi 0, %s132
      %s150 = sphi 0, %s150
      %s152 = sphi 0, %s150
      %s153 = sphi 0, %s152
      %s167 = sphi 0, %s153
      %s171 = sphi 0, %s171
      %s173 = sphi 0, %s171
      %s174 = sphi 0, %s173
      %s188 = sphi 0, %s174
      %s192 = sphi 0, %s192
      %s194 = sphi 0, %s192
      %s195 = sphi 0, %s194
      %s209 = sphi 0, %s195
      %s213 = sphi 0, %s213
      %s215 = sphi 0, %s213
      %s216 = sphi 0, %s215
      %s230 = sphi 0, %s216
      %s234 = sphi 0, %s234
      %s236 = sphi 0, %s234
      %s237 = sphi 0, %s236
      %s251 = sphi 0, %s237
      %s259 = sphi 0, %s261
      %s262 = sphi 0, %s259
      %s263 = sphi 0, %s262
      %s279 = sphi 0, %s263
    $region4: #{tpu_custom_call.1} parent=1 // loop_header_branch
      %28 = sbr.rel (%p26) target = $region8
    $region5: #{tpu_custom_call.1} parent=1 // loop_body
      %s30 = ssub.s32 %s25, 1
      %s31 = ssub.s32 %s25, 2
      %s41 = sadd.s32 1, %s34
      %p42 = scmp.ge.s32.totalorder %s41, 2
      %s43 = scalar_select %p42, 0, %s41
      %s44 = sadd.s32 1, %s33
      %s45 = scalar_select %p42, %s44, %s33
      %p46 = scmp.ge.s32.totalorder %s45, 2
      %s47 = scalar_select %p46, 0, %s45
      %s48 = sadd.s32 1, %s32
      %s49 = scalar_select %p46, %s48, %s32
      %p50 = scmp.ge.s32.totalorder %s49, 2
      %s51 = scalar_select %p50, 0, %s49
      %s52 = ssub.s32 %s32, %s51
      %s53 = ssub.s32 %s33, %s47
      %s54 = sor.u32 %s52, %s53
      %p55 = scmp.eq.s32.totalorder %s54, 0
      %s57 = sadd.s32 %s56, 1
      %s58 = scalar_select %p55, %s56, %s57
      %p61 = pneg %p55
      %p62 = scmp.eq.s32.totalorder %s25, 7
      %p63 = por %p61, %p62
      %p64 = scmp.ne.s32.totalorder %s56, %s59
      %p65 = scmp.eq.s32.totalorder %s25, 0
      %p66 = por %p64, %p65
      %p67 = scmp.ne.s32.totalorder %s56, %s59
      %p68 = scmp.eq.s32.totalorder %s30, 7
      %p69 = por %p67, %p68
      %p70 = scmp.ne.s32.totalorder %s59, %s60
      %p71 = scmp.eq.s32.totalorder %s30, 0
      %p72 = por %p70, %p71
      %p73 = scmp.ne.s32.totalorder %s59, %s60
      %p74 = scmp.eq.s32.totalorder %s31, 7
      %p75 = por %p73, %p74
      %p77 = scmp.ne.s32.totalorder %s60, %s76
      %p78 = scmp.eq.s32.totalorder %s31, 0
      %p79 = por %p77, %p78
      %s80 = ssub.s32 %s32, %s51
      %s81 = ssub.s32 %s34, %s43
      %s82 = sor.u32 %s80, %s81
      %p83 = scmp.eq.s32.totalorder %s82, 0
      %s85 = sadd.s32 %s84, 1
      %s86 = scalar_select %p83, %s84, %s85
      %p89 = pneg %p83
      %p90 = scmp.eq.s32.totalorder %s25, 7
      %p91 = por %p89, %p90
      %p92 = scmp.ne.s32.totalorder %s84, %s87
      %p93 = scmp.eq.s32.totalorder %s25, 0
      %p94 = por %p92, %p93
      %p95 = scmp.ne.s32.totalorder %s84, %s87
      %p96 = scmp.eq.s32.totalorder %s30, 7
      %p97 = por %p95, %p96
      %p98 = scmp.ne.s32.totalorder %s87, %s88
      %p99 = scmp.eq.s32.totalorder %s30, 0
      %p100 = por %p98, %p99
      %p101 = scmp.ne.s32.totalorder %s87, %s88
      %p102 = scmp.eq.s32.totalorder %s31, 7
      %p103 = por %p101, %p102
      %p105 = scmp.ne.s32.totalorder %s88, %s104
      %p106 = scmp.eq.s32.totalorder %s31, 0
      %p107 = por %p105, %p106
      %s109 = sadd.s32 %s108, 1
      %p112 = scmp.eq.s32.totalorder %s25, 7
      %p113 = scmp.ne.s32.totalorder %s108, %s110
      %p114 = scmp.eq.s32.totalorder %s25, 0
      %p115 = por %p113, %p114
      %p116 = scmp.ne.s32.totalorder %s108, %s110
      %p117 = scmp.eq.s32.totalorder %s30, 7
      %p118 = por %p116, %p117
      %p119 = scmp.ne.s32.totalorder %s110, %s111
      %p120 = scmp.eq.s32.totalorder %s30, 0
      %p121 = por %p119, %p120
      %p122 = scmp.ne.s32.totalorder %s110, %s111
      %p123 = scmp.eq.s32.totalorder %s31, 7
      %p124 = por %p122, %p123
      %p126 = scmp.ne.s32.totalorder %s111, %s125
      %p127 = scmp.eq.s32.totalorder %s31, 0
      %p128 = por %p126, %p127
      %s130 = sadd.s32 %s129, 1
      %p133 = scmp.eq.s32.totalorder %s25, 7
      %p134 = scmp.ne.s32.totalorder %s129, %s131
      %p135 = scmp.eq.s32.totalorder %s25, 0
      %p136 = por %p134, %p135
      %p137 = scmp.ne.s32.totalorder %s129, %s131
      %p138 = scmp.eq.s32.totalorder %s30, 7
      %p139 = por %p137, %p138
      %p140 = scmp.ne.s32.totalorder %s131, %s132
      %p141 = scmp.eq.s32.totalorder %s30, 0
      %p142 = por %p140, %p141
      %p143 = scmp.ne.s32.totalorder %s131, %s132
      %p144 = scmp.eq.s32.totalorder %s31, 7
      %p145 = por %p143, %p144
      %p147 = scmp.ne.s32.totalorder %s132, %s146
      %p148 = scmp.eq.s32.totalorder %s31, 0
      %p149 = por %p147, %p148
      %s151 = sadd.s32 %s150, 1
      %p154 = scmp.eq.s32.totalorder %s25, 7
      %p155 = scmp.ne.s32.totalorder %s150, %s152
      %p156 = scmp.eq.s32.totalorder %s25, 0
      %p157 = por %p155, %p156
      %p158 = scmp.ne.s32.totalorder %s150, %s152
      %p159 = scmp.eq.s32.totalorder %s30, 7
      %p160 = por %p158, %p159
      %p161 = scmp.ne.s32.totalorder %s152, %s153
      %p162 = scmp.eq.s32.totalorder %s30, 0
      %p163 = por %p161, %p162
      %p164 = scmp.ne.s32.totalorder %s152, %s153
      %p165 = scmp.eq.s32.totalorder %s31, 7
      %p166 = por %p164, %p165
      %p168 = scmp.ne.s32.totalorder %s153, %s167
      %p169 = scmp.eq.s32.totalorder %s31, 0
      %p170 = por %p168, %p169
      %s172 = sadd.s32 %s171, 1
      %p175 = scmp.eq.s32.totalorder %s25, 7
      %p176 = scmp.ne.s32.totalorder %s171, %s173
      %p177 = scmp.eq.s32.totalorder %s25, 0
      %p178 = por %p176, %p177
      %p179 = scmp.ne.s32.totalorder %s171, %s173
      %p180 = scmp.eq.s32.totalorder %s30, 7
      %p181 = por %p179, %p180
      %p182 = scmp.ne.s32.totalorder %s173, %s174
      %p183 = scmp.eq.s32.totalorder %s30, 0
      %p184 = por %p182, %p183
      %p185 = scmp.ne.s32.totalorder %s173, %s174
      %p186 = scmp.eq.s32.totalorder %s31, 7
      %p187 = por %p185, %p186
      %p189 = scmp.ne.s32.totalorder %s174, %s188
      %p190 = scmp.eq.s32.totalorder %s31, 0
      %p191 = por %p189, %p190
      %s193 = sadd.s32 %s192, 1
      %p196 = scmp.eq.s32.totalorder %s25, 7
      %p197 = scmp.ne.s32.totalorder %s192, %s194
      %p198 = scmp.eq.s32.totalorder %s25, 0
      %p199 = por %p197, %p198
      %p200 = scmp.ne.s32.totalorder %s192, %s194
      %p201 = scmp.eq.s32.totalorder %s30, 7
      %p202 = por %p200, %p201
      %p203 = scmp.ne.s32.totalorder %s194, %s195
      %p204 = scmp.eq.s32.totalorder %s30, 0
      %p205 = por %p203, %p204
      %p206 = scmp.ne.s32.totalorder %s194, %s195
      %p207 = scmp.eq.s32.totalorder %s31, 7
      %p208 = por %p206, %p207
      %p210 = scmp.ne.s32.totalorder %s195, %s209
      %p211 = scmp.eq.s32.totalorder %s31, 0
      %p212 = por %p210, %p211
      %s214 = sadd.s32 %s213, 1
      %p217 = scmp.eq.s32.totalorder %s25, 7
      %p218 = scmp.ne.s32.totalorder %s213, %s215
      %p219 = scmp.eq.s32.totalorder %s25, 0
      %p220 = por %p218, %p219
      %p221 = scmp.ne.s32.totalorder %s213, %s215
      %p222 = scmp.eq.s32.totalorder %s30, 7
      %p223 = por %p221, %p222
      %p224 = scmp.ne.s32.totalorder %s215, %s216
      %p225 = scmp.eq.s32.totalorder %s30, 0
      %p226 = por %p224, %p225
      %p227 = scmp.ne.s32.totalorder %s215, %s216
      %p228 = scmp.eq.s32.totalorder %s31, 7
      %p229 = por %p227, %p228
      %p231 = scmp.ne.s32.totalorder %s216, %s230
      %p232 = scmp.eq.s32.totalorder %s31, 0
      %p233 = por %p231, %p232
      %s235 = sadd.s32 %s234, 1
      %p238 = scmp.eq.s32.totalorder %s25, 7
      %p239 = scmp.ne.s32.totalorder %s234, %s236
      %p240 = scmp.eq.s32.totalorder %s25, 0
      %p241 = por %p239, %p240
      %p242 = scmp.ne.s32.totalorder %s234, %s236
      %p243 = scmp.eq.s32.totalorder %s30, 7
      %p244 = por %p242, %p243
      %p245 = scmp.ne.s32.totalorder %s236, %s237
      %p246 = scmp.eq.s32.totalorder %s30, 0
      %p247 = por %p245, %p246
      %p248 = scmp.ne.s32.totalorder %s236, %s237
      %p249 = scmp.eq.s32.totalorder %s31, 7
      %p250 = por %p248, %p249
      %p252 = scmp.ne.s32.totalorder %s237, %s251
      %p253 = scmp.eq.s32.totalorder %s31, 0
      %p254 = por %p252, %p253
      %s255 = ssub.s32 %s32, %s51
      %s256 = ssub.s32 %s33, %s47
      %s257 = sor.u32 %s255, %s256
      %p258 = scmp.eq.s32.totalorder %s257, 0
      %s260 = sadd.s32 %s259, 1
      %s261 = scalar_select %p258, %s259, %s260
      %p264 = pneg %p258
      %p265 = scmp.eq.s32.totalorder %s25, 7
      %p266 = por %p264, %p265
      %p267 = scmp.ne.s32.totalorder %s259, %s262
      %p268 = scmp.eq.s32.totalorder %s25, 0
      %p269 = por %p267, %p268
      %p270 = scmp.ne.s32.totalorder %s259, %s262
      %p271 = scmp.eq.s32.totalorder %s30, 7
      %p272 = por %p270, %p271
      %p273 = scmp.ne.s32.totalorder %s262, %s263
      %p274 = scmp.eq.s32.totalorder %s30, 0
      %p275 = por %p273, %p274
      %p276 = scmp.ne.s32.totalorder %s262, %s263
      %p277 = scmp.eq.s32.totalorder %s31, 7
      %p278 = por %p276, %p277
      %p280 = scmp.ne.s32.totalorder %s263, %s279
      %p281 = scmp.eq.s32.totalorder %s31, 0
      %p282 = por %p280, %p281
      %p283 = scmp.le.s32.totalorder 1, %s25
      %p284 = scmp.lt.s32.totalorder %s25, 9
      %p285 = pnand %p283, %p284
      %p286 = pneg %p285
      // Predicated region
      $region9: #{tpu_custom_call.1} parent=5 // pred_check
        _
      $region10: #{tpu_custom_call.1} parent=5 // pred_check_branch
        %288 = sbr.rel (%p285) target = $region12
      $region11: #{tpu_custom_call.1} parent=5 // pred_region
        %s289 = ssub.s32 %s25, 1
        // Predicated region
        $region13: #{tpu_custom_call.1} parent=11 // pred_check
          %p290 = pneg %p121
        $region14: #{tpu_custom_call.1} parent=11 // pred_check_branch
          %292 = sbr.rel (%p290) target = $region16
        $region15: #{tpu_custom_call.1} parent=11 // pred_region
          _
        $region16: #{tpu_custom_call.1} parent=11 // pred_fallthru
          _
        // Predicated region
        $region17: #{tpu_custom_call.1} parent=11 // pred_check
          %p293 = pneg %p142
        $region18: #{tpu_custom_call.1} parent=11 // pred_check_branch
          %295 = sbr.rel (%p293) target = $region20
        $region19: #{tpu_custom_call.1} parent=11 // pred_region
          _
        $region20: #{tpu_custom_call.1} parent=11 // pred_fallthru
          _
        // Predicated region
        $region21: #{tpu_custom_call.1} parent=11 // pred_check
          %p296 = pneg %p163
        $region22: #{tpu_custom_call.1} parent=11 // pred_check_branch
          %298 = sbr.rel (%p296) target = $region24
        $region23: #{tpu_custom_call.1} parent=11 // pred_region
          _
        $region24: #{tpu_custom_call.1} parent=11 // pred_fallthru
          _
        // Predicated region
        $region25: #{tpu_custom_call.1} parent=11 // pred_check
          %p299 = pneg %p184
        $region26: #{tpu_custom_call.1} parent=11 // pred_check_branch
          %301 = sbr.rel (%p299) target = $region28
        $region27: #{tpu_custom_call.1} parent=11 // pred_region
          _
        $region28: #{tpu_custom_call.1} parent=11 // pred_fallthru
          _
        // Predicated region
        $region29: #{tpu_custom_call.1} parent=11 // pred_check
          %p302 = pneg %p205
        $region30: #{tpu_custom_call.1} parent=11 // pred_check_branch
          %304 = sbr.rel (%p302) target = $region32
        $region31: #{tpu_custom_call.1} parent=11 // pred_region
          _
        $region32: #{tpu_custom_call.1} parent=11 // pred_fallthru
          _
        // Predicated region
        $region33: #{tpu_custom_call.1} parent=11 // pred_check
          %p305 = pneg %p226
        $region34: #{tpu_custom_call.1} parent=11 // pred_check_branch
          %307 = sbr.rel (%p305) target = $region36
        $region35: #{tpu_custom_call.1} parent=11 // pred_region
          _
        $region36: #{tpu_custom_call.1} parent=11 // pred_fallthru
          _
        // Predicated region
        $region37: #{tpu_custom_call.1} parent=11 // pred_check
          %p308 = pneg %p247
        $region38: #{tpu_custom_call.1} parent=11 // pred_check_branch
          %310 = sbr.rel (%p308) target = $region40
        $region39: #{tpu_custom_call.1} parent=11 // pred_region
          _
        $region40: #{tpu_custom_call.1} parent=11 // pred_fallthru
          _
      $region12: #{tpu_custom_call.1} parent=5 // pred_fallthru
        _
      %p311 = scmp.lt.s32.totalorder %s25, 8
      // Predicated region
      $region41: #{tpu_custom_call.1} parent=5 // pred_check
        %p312 = pneg %p311
      $region42: #{tpu_custom_call.1} parent=5 // pred_check_branch
        %314 = sbr.rel (%p312) target = $region44
      $region43: #{tpu_custom_call.1} parent=5 // pred_region
        // Predicated region
        $region45: #{tpu_custom_call.1} parent=43 // pred_check
          %p315 = pneg %p66
        $region46: #{tpu_custom_call.1} parent=43 // pred_check_branch
          %317 = sbr.rel (%p315) target = $region48
        $region47: #{tpu_custom_call.1} parent=43 // pred_region
          %s318 = sand.u32 %s56, 1
          %s319 = scalar_lea.sflag [#allocation8], %s318
          %s320 = sand.u32 %s56, 1
          %s321 = smul.addr %s320, 16
          %s322 = scalar_lea.vmem [#allocation7], %s321
          %s324 = ssub.s32 256, 256
          %325 = vsyncadd %s319, %s324
          %s326 = smul.addr %s32, 4
          %s327 = sadd.s32 %s33, %s326
          %s328 = smul.addr %s327, 128
          %s329 = scalar_lea.hbm %s0, %s328
          %s330 = sshll.u32 %s322, 4
          %s331 = int_to_ptr.vmem [resolvable:$true] %s330
          %336 = dma.hbm_to_vmem [thread:$0]  %s329, 256, %s331, %s319, 256, 128, 8
        $region48: #{tpu_custom_call.1} parent=43 // pred_fallthru
          _
        // Predicated region
        $region49: #{tpu_custom_call.1} parent=43 // pred_check
          %p337 = pneg %p94
        $region50: #{tpu_custom_call.1} parent=43 // pred_check_branch
          %339 = sbr.rel (%p337) target = $region52
        $region51: #{tpu_custom_call.1} parent=43 // pred_region
          %s340 = sand.u32 %s84, 1
          %s341 = scalar_lea.sflag [#allocation11], %s340
          %s342 = sand.u32 %s84, 1
          %s343 = smul.addr %s342, 16
          %s344 = scalar_lea.vmem [#allocation10], %s343
          %s346 = ssub.s32 256, 256
          %347 = vsyncadd %s341, %s346
          %s348 = smul.addr %s32, 4
          %s349 = sadd.s32 %s34, %s348
          %s350 = smul.addr %s349, 128
          %s351 = scalar_lea.hbm %s1, %s350
          %s352 = sshll.u32 %s344, 4
          %s353 = int_to_ptr.vmem [resolvable:$true] %s352
          %358 = dma.hbm_to_vmem [thread:$0]  %s351, 256, %s353, %s341, 256, 128, 8
        $region52: #{tpu_custom_call.1} parent=43 // pred_fallthru
          _
      $region44: #{tpu_custom_call.1} parent=5 // pred_fallthru
        _
      %p359 = scmp.le.s32.totalorder 1, %s25
      %p360 = scmp.lt.s32.totalorder %s25, 9
      %p361 = pnand %p359, %p360
      %p362 = pneg %p361
      // Predicated region
      $region53: #{tpu_custom_call.1} parent=5 // pred_check
        _
      $region54: #{tpu_custom_call.1} parent=5 // pred_check_branch
        %364 = sbr.rel (%p361) target = $region56
      $region55: #{tpu_custom_call.1} parent=5 // pred_region
        %s365 = ssub.s32 %s25, 1
        %s366 = sand.u32 %s59, 1
        %s367 = scalar_lea.sflag [#allocation8], %s366
        %s368 = sand.u32 %s59, 1
        %s369 = smul.addr %s368, 16
        %s370 = scalar_lea.vmem [#allocation7], %s369
        // Predicated region
        $region57: #{tpu_custom_call.1} parent=55 // pred_check
          %p371 = pneg %p72
        $region58: #{tpu_custom_call.1} parent=55 // pred_check_branch
          %373 = sbr.rel (%p371) target = $region60
        $region59: #{tpu_custom_call.1} parent=55 // pred_region
          %374 = dma.done %s367, 256
        $region60: #{tpu_custom_call.1} parent=55 // pred_fallthru
          _
        %s375 = sand.u32 %s87, 1
        %s376 = scalar_lea.sflag [#allocation11], %s375
        %s377 = sand.u32 %s87, 1
        %s378 = smul.addr %s377, 16
        %s379 = scalar_lea.vmem [#allocation10], %s378
        // Predicated region
        $region61: #{tpu_custom_call.1} parent=55 // pred_check
          %p380 = pneg %p100
        $region62: #{tpu_custom_call.1} parent=55 // pred_check_branch
          %382 = sbr.rel (%p380) target = $region64
        $region63: #{tpu_custom_call.1} parent=55 // pred_region
          %383 = dma.done %s376, 256
        $region64: #{tpu_custom_call.1} parent=55 // pred_fallthru
          _
        %s384 = sand.u32 %s59, 1
        %s385 = scalar_lea.sflag [#allocation8], %s384
        %s386 = sand.u32 %s59, 1
        %s387 = smul.addr %s386, 16
        %s388 = scalar_lea.vmem [#allocation7], %s387
        %p389 = pneg %p72
        %p390 = pneg %p69
        %s391 = sand.u32 %s87, 1
        %s392 = scalar_lea.sflag [#allocation11], %s391
        %s393 = sand.u32 %s87, 1
        %s394 = smul.addr %s393, 16
        %s395 = scalar_lea.vmem [#allocation10], %s394
        %p396 = pneg %p100
        %p397 = pneg %p97
        %p398 = pneg %p121
        %p399 = pneg %p118
        %p400 = pneg %p142
        %p401 = pneg %p139
        %p402 = pneg %p163
        %p403 = pneg %p160
        %p404 = pneg %p184
        %p405 = pneg %p181
        %p406 = pneg %p205
        %p407 = pneg %p202
        %p408 = pneg %p226
        %p409 = pneg %p223
        %p410 = pneg %p247
        %p411 = pneg %p244
        %p412 = pneg %p275
        %p413 = pneg %p272
        %s414 = sand.u32 %s262, 1
        %s415 = scalar_lea.sflag [#allocation9], %s414
        %s416 = sand.u32 %s262, 1
        %s417 = smul.addr %s416, 16
        %s418 = scalar_lea.vmem [#allocation12], %s417
        %p420 = scmp.eq.s32.totalorder %s37, 0
        // Predicated region
        $region65: #{tpu_custom_call.1} parent=55 // pred_check
          %p421 = pneg %p420
        $region66: #{tpu_custom_call.1} parent=55 // pred_check_branch
          %423 = sbr.rel (%p421) target = $region68
        $region67: #{tpu_custom_call.1} parent=55 // pred_region
          %v424 = vld [vmem:[%s370] sm:$0xff]
          %v425 = vld [vmem:[%s370 + $0x8] sm:$0xff]
          %v426 = vld [vmem:[%s2] sm:$0x3]
          %v427 = vld [vmem:[%s3] sm:$0x3]
          %429 = vset.pattern.permute.xlu0 0
          %430 = vperm.xlu0 %429, %v427
          %v431 = vpop.permute.xlu0 %430
          %vm433 = vcmask 130048
          %v435 = vsel %vm433, %v426, 0
          %437 = vmatprep.subr.mxu0 0.0
          %438 = vmatpush1.msra.mxu0 %v424
          %439 = vmatprep.subr.mxu0 0.0
          %440 = vmatpush1.msra.mxu0 %v425
          %441 = vmatprep.subr.mxu0 0.0
          %442 = vmatpush1.msra.mxu0 0.0
          %443 = vmatprep.subr.mxu0 0.0
          %444 = vmatpush1.msra.mxu0 0.0
          %445 = vmatprep.subr.mxu0 0.0
          %446 = vmatpush1.msra.mxu0 0.0
          %447 = vmatprep.subr.mxu0 0.0
          %448 = vmatpush1.msra.mxu0 0.0
          %449 = vmatprep.subr.mxu0 0.0
          %450 = vmatpush1.msra.mxu0 0.0
          %451 = vmatprep.subr.mxu0 0.0
          %452 = vmatpush1.msra.mxu0 0.0
          %453 = vmatprep.subr.mxu0 0.0
          %454 = vmatpush1.msra.mxu0 0.0
          %455 = vmatprep.subr.mxu0 0.0
          %456 = vmatpush1.msra.mxu0 0.0
          %457 = vmatprep.subr.mxu0 0.0
          %458 = vmatpush1.msra.mxu0 0.0
          %459 = vmatprep.subr.mxu0 0.0
          %460 = vmatpush1.msra.mxu0 0.0
          %461 = vmatprep.subr.mxu0 0.0
          %462 = vmatpush1.msra.mxu0 0.0
          %463 = vmatprep.subr.mxu0 0.0
          %464 = vmatpush1.msra.mxu0 0.0
          %465 = vmatprep.subr.mxu0 0.0
          %466 = vmatpush1.msra.mxu0 0.0
          %467 = vmatprep.subr.mxu0 0.0
          %468 = vmatpush1.msra.mxu0 0.0
          %469 = vmatprep.subr.mxu0 0.0
          %470 = vmatpush1.msra.mxu0 0.0
          %471 = vmatprep.subr.mxu0 0.0
          %472 = vmatpush1.msra.mxu0 0.0
          %473 = vmatprep.subr.mxu0 0.0
          %474 = vmatpush1.msra.mxu0 0.0
          %475 = vmatprep.subr.mxu0 0.0
          %476 = vmatpush1.msra.mxu0 0.0
          %477 = vmatprep.subr.mxu0 0.0
          %478 = vmatpush1.msra.mxu0 0.0
          %479 = vmatprep.subr.mxu0 0.0
          %480 = vmatpush1.msra.mxu0 0.0
          %481 = vmatprep.subr.mxu0 0.0
          %482 = vmatpush1.msra.mxu0 0.0
          %483 = vmatprep.subr.mxu0 0.0
          %484 = vmatpush1.msra.mxu0 0.0
          %485 = vmatprep.subr.mxu0 0.0
          %486 = vmatpush1.msra.mxu0 0.0
          %487 = vmatprep.subr.mxu0 0.0
          %488 = vmatpush1.msra.mxu0 0.0
          %489 = vmatprep.subr.mxu0 0.0
          %490 = vmatpush1.msra.mxu0 0.0
          %491 = vmatprep.subr.mxu0 0.0
          %492 = vmatpush1.msra.mxu0 0.0
          %493 = vmatprep.subr.mxu0 0.0
          %494 = vmatpush1.msra.mxu0 0.0
          %495 = vmatprep.subr.mxu0 0.0
          %496 = vmatpush1.msra.mxu0 0.0
          %497 = vmatprep.subr.mxu0 0.0
          %498 = vmatpush1.msra.mxu0 0.0
          %499 = vmatprep.subr.mxu0 0.0
          %500 = vmatpush1.msra.mxu0 0.0
          %501 = vmatprep.mubr.f32.mxu0 0.0
          %502 = vmatmul.mubr.f32.gmra.mrb[0].mxu0 %v435
          %v503 = vpop.f32.mrb[0].mxu0
          %v504 = vadd.f32 %v431, %v503
          %v505 = vpop.f32.mrb[0].mxu0
          %506 = vdwg.mxu0
          %507 = vst [vmem:[#allocation2] sm:$0x3] %v504
          %508 = vst [vmem:[#allocation3] sm:$0x1] -inf
          %509 = vst [vmem:[#allocation4] sm:$0x1] 0.0
          %510 = vst [vmem:[#allocation5] sm:$0xff] 0.0
          %511 = vst [vmem:[#allocation5 + $0x8] sm:$0xff] 0.0
        $region68: #{tpu_custom_call.1} parent=55 // pred_fallthru
          _
        %v512 = vld [vmem:[%s379] sm:$0xff]
        %v513 = vld [vmem:[%s379 + $0x8] sm:$0xff]
        %v514 = vld [vmem:[%s4] sm:$0x3]
        %v515 = vld [vmem:[%s5] sm:$0x3]
        %517 = vset.pattern.permute.xlu0 0
        %518 = vperm.xlu0 %517, %v515
        %v519 = vpop.permute.xlu0 %518
        %vm521 = vcmask 130048
        %v523 = vsel %vm521, %v514, 0
        %525 = vmatprep.subr.mxu0 0.0
        %526 = vmatpush1.msra.mxu0 %v512
        %527 = vmatprep.subr.mxu0 0.0
        %528 = vmatpush1.msra.mxu0 %v513
        %529 = vmatprep.subr.mxu0 0.0
        %530 = vmatpush1.msra.mxu0 0.0
        %531 = vmatprep.subr.mxu0 0.0
        %532 = vmatpush1.msra.mxu0 0.0
        %533 = vmatprep.subr.mxu0 0.0
        %534 = vmatpush1.msra.mxu0 0.0
        %535 = vmatprep.subr.mxu0 0.0
        %536 = vmatpush1.msra.mxu0 0.0
        %537 = vmatprep.subr.mxu0 0.0
        %538 = vmatpush1.msra.mxu0 0.0
        %539 = vmatprep.subr.mxu0 0.0
        %540 = vmatpush1.msra.mxu0 0.0
        %541 = vmatprep.subr.mxu0 0.0
        %542 = vmatpush1.msra.mxu0 0.0
        %543 = vmatprep.subr.mxu0 0.0
        %544 = vmatpush1.msra.mxu0 0.0
        %545 = vmatprep.subr.mxu0 0.0
        %546 = vmatpush1.msra.mxu0 0.0
        %547 = vmatprep.subr.mxu0 0.0
        %548 = vmatpush1.msra.mxu0 0.0
        %549 = vmatprep.subr.mxu0 0.0
        %550 = vmatpush1.msra.mxu0 0.0
        %551 = vmatprep.subr.mxu0 0.0
        %552 = vmatpush1.msra.mxu0 0.0
        %553 = vmatprep.subr.mxu0 0.0
        %554 = vmatpush1.msra.mxu0 0.0
        %555 = vmatprep.subr.mxu0 0.0
        %556 = vmatpush1.msra.mxu0 0.0
        %557 = vmatprep.subr.mxu0 0.0
        %558 = vmatpush1.msra.mxu0 0.0
        %559 = vmatprep.subr.mxu0 0.0
        %560 = vmatpush1.msra.mxu0 0.0
        %561 = vmatprep.subr.mxu0 0.0
        %562 = vmatpush1.msra.mxu0 0.0
        %563 = vmatprep.subr.mxu0 0.0
        %564 = vmatpush1.msra.mxu0 0.0
        %565 = vmatprep.subr.mxu0 0.0
        %566 = vmatpush1.msra.mxu0 0.0
        %567 = vmatprep.subr.mxu0 0.0
        %568 = vmatpush1.msra.mxu0 0.0
        %569 = vmatprep.subr.mxu0 0.0
        %570 = vmatpush1.msra.mxu0 0.0
        %571 = vmatprep.subr.mxu0 0.0
        %572 = vmatpush1.msra.mxu0 0.0
        %573 = vmatprep.subr.mxu0 0.0
        %574 = vmatpush1.msra.mxu0 0.0
        %575 = vmatprep.subr.mxu0 0.0
        %576 = vmatpush1.msra.mxu0 0.0
        %577 = vmatprep.subr.mxu0 0.0
        %578 = vmatpush1.msra.mxu0 0.0
        %579 = vmatprep.subr.mxu0 0.0
        %580 = vmatpush1.msra.mxu0 0.0
        %581 = vmatprep.subr.mxu0 0.0
        %582 = vmatpush1.msra.mxu0 0.0
        %583 = vmatprep.subr.mxu0 0.0
        %584 = vmatpush1.msra.mxu0 0.0
        %585 = vmatprep.subr.mxu0 0.0
        %586 = vmatpush1.msra.mxu0 0.0
        %587 = vmatprep.subr.mxu0 0.0
        %588 = vmatpush1.msra.mxu0 0.0
        %589 = vmatprep.mubr.f32.mxu0 0.0
        %590 = vmatmul.mubr.f32.gmra.mrb[0].mxu0 %v523
        %v591 = vpop.f32.mrb[0].mxu0
        %v592 = vadd.f32 %v519, %v591
        %v593 = vpop.f32.mrb[0].mxu0
        %594 = vdwg.mxu0
        %v595 = vld [vmem:[%s6] sm:$0xff]
        %v596 = vld [vmem:[%s6 + $0x8] sm:$0xff]
        %v597 = vld [vmem:[%s7] sm:$0xff]
        %v598 = vld [vmem:[%s7 + $0x8] sm:$0xff]
        %600 = vset.pattern.permute.xlu0 0
        %601 = vperm.xlu0 %600, %v597
        %v602 = vpop.permute.xlu0 %601
        %605 = vset.pattern.permute.xlu0 0
        %606 = vperm.xlu0 %605, %v598
        %v607 = vpop.permute.xlu0 %606
        %v610 = vsel %vm521, %v595, 0
        %v613 = vsel %vm521, %v596, 0
        %615 = vmatprep.subr.mxu0 0.0
        %616 = vmatpush1.msra.mxu0 %v512
        %617 = vmatprep.subr.mxu0 0.0
        %618 = vmatpush1.msra.mxu0 %v513
        %619 = vmatprep.subr.mxu0 0.0
        %620 = vmatpush1.msra.mxu0 0.0
        %621 = vmatprep.subr.mxu0 0.0
        %622 = vmatpush1.msra.mxu0 0.0
        %623 = vmatprep.subr.mxu0 0.0
        %624 = vmatpush1.msra.mxu0 0.0
        %625 = vmatprep.subr.mxu0 0.0
        %626 = vmatpush1.msra.mxu0 0.0
        %627 = vmatprep.subr.mxu0 0.0
        %628 = vmatpush1.msra.mxu0 0.0
        %629 = vmatprep.subr.mxu0 0.0
        %630 = vmatpush1.msra.mxu0 0.0
        %631 = vmatprep.subr.mxu0 0.0
        %632 = vmatpush1.msra.mxu0 0.0
        %633 = vmatprep.subr.mxu0 0.0
        %634 = vmatpush1.msra.mxu0 0.0
        %635 = vmatprep.subr.mxu0 0.0
        %636 = vmatpush1.msra.mxu0 0.0
        %637 = vmatprep.subr.mxu0 0.0
        %638 = vmatpush1.msra.mxu0 0.0
        %639 = vmatprep.subr.mxu0 0.0
        %640 = vmatpush1.msra.mxu0 0.0
        %641 = vmatprep.subr.mxu0 0.0
        %642 = vmatpush1.msra.mxu0 0.0
        %643 = vmatprep.subr.mxu0 0.0
        %644 = vmatpush1.msra.mxu0 0.0
        %645 = vmatprep.subr.mxu0 0.0
        %646 = vmatpush1.msra.mxu0 0.0
        %647 = vmatprep.subr.mxu0 0.0
        %648 = vmatpush1.msra.mxu0 0.0
        %649 = vmatprep.subr.mxu0 0.0
        %650 = vmatpush1.msra.mxu0 0.0
        %651 = vmatprep.subr.mxu0 0.0
        %652 = vmatpush1.msra.mxu0 0.0
        %653 = vmatprep.subr.mxu0 0.0
        %654 = vmatpush1.msra.mxu0 0.0
        %655 = vmatprep.subr.mxu0 0.0
        %656 = vmatpush1.msra.mxu0 0.0
        %657 = vmatprep.subr.mxu0 0.0
        %658 = vmatpush1.msra.mxu0 0.0
        %659 = vmatprep.subr.mxu0 0.0
        %660 = vmatpush1.msra.mxu0 0.0
        %661 = vmatprep.subr.mxu0 0.0
        %662 = vmatpush1.msra.mxu0 0.0
        %663 = vmatprep.subr.mxu0 0.0
        %664 = vmatpush1.msra.mxu0 0.0
        %665 = vmatprep.subr.mxu0 0.0
        %666 = vmatpush1.msra.mxu0 0.0
        %667 = vmatprep.subr.mxu0 0.0
        %668 = vmatpush1.msra.mxu0 0.0
        %669 = vmatprep.subr.mxu0 0.0
        %670 = vmatpush1.msra.mxu0 0.0
        %671 = vmatprep.subr.mxu0 0.0
        %672 = vmatpush1.msra.mxu0 0.0
        %673 = vmatprep.subr.mxu0 0.0
        %674 = vmatpush1.msra.mxu0 0.0
        %675 = vmatprep.subr.mxu0 0.0
        %676 = vmatpush1.msra.mxu0 0.0
        %677 = vmatprep.subr.mxu0 0.0
        %678 = vmatpush1.msra.mxu0 0.0
        %679 = vmatprep.mubr.f32.mxu0 0.0
        %680 = vmatmul.mubr.f32.gmra.mrb[0].mxu0 %v610
        %v681 = vpop.f32.mrb[0].mxu0
        %v682 = vadd.f32 %v602, %v681
        %v683 = vpop.f32.mrb[0].mxu0
        %684 = vmatprep.mubr.f32.mxu0 0.0
        %685 = vmatmul.mubr.f32.gmra.mrb[0].mxu0 %v613
        %v686 = vpop.f32.mrb[0].mxu0
        %v687 = vadd.f32 %v607, %v686
        %v688 = vpop.f32.mrb[0].mxu0
        %689 = vdwg.mxu0
        %v690 = vld [vmem:[#allocation2] sm:$0x3]
        %691 = vxpose.xlu0.b32.start [1/16] %v592, 128
        %692 = vxpose.xlu0.b32.cont [2/16] 0.0, 128
        %693 = vxpose.xlu0.b32.cont [3/16] 0.0, 128
        %694 = vxpose.xlu0.b32.cont [4/16] 0.0, 128
        %695 = vxpose.xlu0.b32.cont [5/16] 0.0, 128
        %696 = vxpose.xlu0.b32.cont [6/16] 0.0, 128
        %697 = vxpose.xlu0.b32.cont [7/16] 0.0, 128
        %698 = vxpose.xlu0.b32.cont [8/16] 0.0, 128
        %699 = vxpose.xlu0.b32.cont [9/16] 0.0, 128
        %700 = vxpose.xlu0.b32.cont [10/16] 0.0, 128
        %701 = vxpose.xlu0.b32.cont [11/16] 0.0, 128
        %702 = vxpose.xlu0.b32.cont [12/16] 0.0, 128
        %703 = vxpose.xlu0.b32.cont [13/16] 0.0, 128
        %704 = vxpose.xlu0.b32.cont [14/16] 0.0, 128
        %705 = vxpose.xlu0.b32.cont [15/16] 0.0, 128
        %706 = vxpose.xlu0.b32.end [16/16] 0.0, 128
        %v707 = vpop.trf.xlu0
        %v708 = vpop.trf.xlu0
        %v709 = vpop.trf.xlu0
        %v710 = vpop.trf.xlu0
        %v711 = vpop.trf.xlu0
        %v712 = vpop.trf.xlu0
        %v713 = vpop.trf.xlu0
        %v714 = vpop.trf.xlu0
        %v715 = vpop.trf.xlu0
        %v716 = vpop.trf.xlu0
        %v717 = vpop.trf.xlu0
        %v718 = vpop.trf.xlu0
        %v719 = vpop.trf.xlu0
        %v720 = vpop.trf.xlu0
        %v721 = vpop.trf.xlu0
        %v722 = vpop.trf.xlu0
        %vm723 = vcmask 15360
        %v725 = vsel %vm723, %v707, 0
        %v728 = vsel %vm723, %v708, 0
        %v731 = vsel %vm723, %v709, 0
        %v734 = vsel %vm723, %v710, 0
        %v737 = vsel %vm723, %v711, 0
        %v740 = vsel %vm723, %v712, 0
        %v743 = vsel %vm723, %v713, 0
        %v746 = vsel %vm723, %v714, 0
        %v749 = vsel %vm723, %v715, 0
        %v752 = vsel %vm723, %v716, 0
        %v755 = vsel %vm723, %v717, 0
        %v758 = vsel %vm723, %v718, 0
        %v761 = vsel %vm723, %v719, 0
        %v764 = vsel %vm723, %v720, 0
        %v767 = vsel %vm723, %v721, 0
        %v770 = vsel %vm723, %v722, 0
        %vm772 = vcmask 1041408
        %v774 = vsel %vm772, %v690, 0
        %776 = vmatprep.subr.mxu0 0.0
        %777 = vmatpush1.msra.mxu0 %v774
        %778 = vmatprep.subr.mxu0 0.0
        %779 = vmatpush1.msra.mxu0 0.0
        %780 = vmatprep.subr.mxu0 0.0
        %781 = vmatpush1.msra.mxu0 0.0
        %782 = vmatprep.subr.mxu0 0.0
        %783 = vmatpush1.msra.mxu0 0.0
        %784 = vmatprep.subr.mxu0 0.0
        %785 = vmatpush1.msra.mxu0 0.0
        %786 = vmatprep.subr.mxu0 0.0
        %787 = vmatpush1.msra.mxu0 0.0
        %788 = vmatprep.subr.mxu0 0.0
        %789 = vmatpush1.msra.mxu0 0.0
        %790 = vmatprep.subr.mxu0 0.0
        %791 = vmatpush1.msra.mxu0 0.0
        %792 = vmatprep.subr.mxu0 0.0
        %793 = vmatpush1.msra.mxu0 0.0
        %794 = vmatprep.subr.mxu0 0.0
        %795 = vmatpush1.msra.mxu0 0.0
        %796 = vmatprep.subr.mxu0 0.0
        %797 = vmatpush1.msra.mxu0 0.0
        %798 = vmatprep.subr.mxu0 0.0
        %799 = vmatpush1.msra.mxu0 0.0
        %800 = vmatprep.subr.mxu0 0.0
        %801 = vmatpush1.msra.mxu0 0.0
        %802 = vmatprep.subr.mxu0 0.0
        %803 = vmatpush1.msra.mxu0 0.0
        %804 = vmatprep.subr.mxu0 0.0
        %805 = vmatpush1.msra.mxu0 0.0
        %806 = vmatprep.subr.mxu0 0.0
        %807 = vmatpush1.msra.mxu0 0.0
        %808 = vmatprep.subr.mxu0 0.0
        %809 = vmatpush1.msra.mxu0 0.0
        %810 = vmatprep.subr.mxu0 0.0
        %811 = vmatpush1.msra.mxu0 0.0
        %812 = vmatprep.subr.mxu0 0.0
        %813 = vmatpush1.msra.mxu0 0.0
        %814 = vmatprep.subr.mxu0 0.0
        %815 = vmatpush1.msra.mxu0 0.0
        %816 = vmatprep.subr.mxu0 0.0
        %817 = vmatpush1.msra.mxu0 0.0
        %818 = vmatprep.subr.mxu0 0.0
        %819 = vmatpush1.msra.mxu0 0.0
        %820 = vmatprep.subr.mxu0 0.0
        %821 = vmatpush1.msra.mxu0 0.0
        %822 = vmatprep.subr.mxu0 0.0
        %823 = vmatpush1.msra.mxu0 0.0
        %824 = vmatprep.subr.mxu0 0.0
        %825 = vmatpush1.msra.mxu0 0.0
        %826 = vmatprep.subr.mxu0 0.0
        %827 = vmatpush1.msra.mxu0 0.0
        %828 = vmatprep.subr.mxu0 0.0
        %829 = vmatpush1.msra.mxu0 0.0
        %830 = vmatprep.subr.mxu0 0.0
        %831 = vmatpush1.msra.mxu0 0.0
        %832 = vmatprep.subr.mxu0 0.0
        %833 = vmatpush1.msra.mxu0 0.0
        %834 = vmatprep.subr.mxu0 0.0
        %835 = vmatpush1.msra.mxu0 0.0
        %836 = vmatprep.subr.mxu0 0.0
        %837 = vmatpush1.msra.mxu0 0.0
        %838 = vmatprep.subr.mxu0 0.0
        %839 = vmatpush1.msra.mxu0 0.0
        %840 = vmatprep.mubr.f32.mxu0 0.0
        %841 = vmatmul.mubr.f32.gmra.mrb[0].mxu0 %v725
        %v842 = vpop.f32.mrb[0].mxu0
        %v843 = vadd.f32 0.0, %v842
        %v844 = vpop.f32.mrb[0].mxu0
        %845 = vmatprep.mubr.f32.mxu0 0.0
        %846 = vmatmul.mubr.f32.gmra.mrb[0].mxu0 %v728
        %v847 = vpop.f32.mrb[0].mxu0
        %v848 = vadd.f32 0.0, %v847
        %v849 = vpop.f32.mrb[0].mxu0
        %850 = vmatprep.mubr.f32.mxu0 0.0
        %851 = vmatmul.mubr.f32.gmra.mrb[0].mxu0 %v731
        %v852 = vpop.f32.mrb[0].mxu0
        %v853 = vadd.f32 0.0, %v852
        %v854 = vpop.f32.mrb[0].mxu0
        %855 = vmatprep.mubr.f32.mxu0 0.0
        %856 = vmatmul.mubr.f32.gmra.mrb[0].mxu0 %v734
        %v857 = vpop.f32.mrb[0].mxu0
        %v858 = vadd.f32 0.0, %v857
        %v859 = vpop.f32.mrb[0].mxu0
        %860 = vmatprep.mubr.f32.mxu0 0.0
        %861 = vmatmul.mubr.f32.gmra.mrb[0].mxu0 %v737
        %v862 = vpop.f32.mrb[0].mxu0
        %v863 = vadd.f32 0.0, %v862
        %v864 = vpop.f32.mrb[0].mxu0
        %865 = vmatprep.mubr.f32.mxu0 0.0
        %866 = vmatmul.mubr.f32.gmra.mrb[0].mxu0 %v740
        %v867 = vpop.f32.mrb[0].mxu0
        %v868 = vadd.f32 0.0, %v867
        %v869 = vpop.f32.mrb[0].mxu0
        %870 = vmatprep.mubr.f32.mxu0 0.0
        %871 = vmatmul.mubr.f32.gmra.mrb[0].mxu0 %v743
        %v872 = vpop.f32.mrb[0].mxu0
        %v873 = vadd.f32 0.0, %v872
        %v874 = vpop.f32.mrb[0].mxu0
        %875 = vmatprep.mubr.f32.mxu0 0.0
        %876 = vmatmul.mubr.f32.gmra.mrb[0].mxu0 %v746
        %v877 = vpop.f32.mrb[0].mxu0
        %v878 = vadd.f32 0.0, %v877
        %v879 = vpop.f32.mrb[0].mxu0
        %880 = vmatprep.mubr.f32.mxu0 0.0
        %881 = vmatmul.mubr.f32.gmra.mrb[0].mxu0 %v749
        %v882 = vpop.f32.mrb[0].mxu0
        %v883 = vadd.f32 0.0, %v882
        %v884 = vpop.f32.mrb[0].mxu0
        %885 = vmatprep.mubr.f32.mxu0 0.0
        %886 = vmatmul.mubr.f32.gmra.mrb[0].mxu0 %v752
        %v887 = vpop.f32.mrb[0].mxu0
        %v888 = vadd.f32 0.0, %v887
        %v889 = vpop.f32.mrb[0].mxu0
        %890 = vmatprep.mubr.f32.mxu0 0.0
        %891 = vmatmul.mubr.f32.gmra.mrb[0].mxu0 %v755
        %v892 = vpop.f32.mrb[0].mxu0
        %v893 = vadd.f32 0.0, %v892
        %v894 = vpop.f32.mrb[0].mxu0
        %895 = vmatprep.mubr.f32.mxu0 0.0
        %896 = vmatmul.mubr.f32.gmra.mrb[0].mxu0 %v758
        %v897 = vpop.f32.mrb[0].mxu0
        %v898 = vadd.f32 0.0, %v897
        %v899 = vpop.f32.mrb[0].mxu0
        %900 = vmatprep.mubr.f32.mxu0 0.0
        %901 = vmatmul.mubr.f32.gmra.mrb[0].mxu0 %v761
        %v902 = vpop.f32.mrb[0].mxu0
        %v903 = vadd.f32 0.0, %v902
        %v904 = vpop.f32.mrb[0].mxu0
        %905 = vmatprep.mubr.f32.mxu0 0.0
        %906 = vmatmul.mubr.f32.gmra.mrb[0].mxu0 %v764
        %v907 = vpop.f32.mrb[0].mxu0
        %v908 = vadd.f32 0.0, %v907
        %v909 = vpop.f32.mrb[0].mxu0
        %910 = vmatprep.mubr.f32.mxu0 0.0
        %911 = vmatmul.mubr.f32.gmra.mrb[0].mxu0 %v767
        %v912 = vpop.f32.mrb[0].mxu0
        %v913 = vadd.f32 0.0, %v912
        %v914 = vpop.f32.mrb[0].mxu0
        %915 = vmatprep.mubr.f32.mxu0 0.0
        %916 = vmatmul.mubr.f32.gmra.mrb[0].mxu0 %v770
        %v917 = vpop.f32.mrb[0].mxu0
        %v918 = vadd.f32 0.0, %v917
        %v919 = vpop.f32.mrb[0].mxu0
        %920 = vdwg.mxu0
        %v921 = vld [vmem:[#allocation3] sm:$0x1]
        %v922 = vmax.f32 %v843, %v863
        %v923 = vmax.f32 %v848, %v868
        %v924 = vmax.f32 %v853, %v873
        %v925 = vmax.f32 %v858, %v878
        %v926 = vmax.f32 %v922, %v883
        %v927 = vmax.f32 %v923, %v888
        %v928 = vmax.f32 %v924, %v893
        %v929 = vmax.f32 %v925, %v898
        %v930 = vmax.f32 %v926, %v903
        %v931 = vmax.f32 %v927, %v908
        %v932 = vmax.f32 %v928, %v913
        %v933 = vmax.f32 %v929, %v918
        %v934 = vmax.f32 %v930, %v931
        %v935 = vmax.f32 %v932, %v933
        %v936 = vmax.f32 %v934, %v935
        %v937 = vrot.slane %v936, 4
        %v938 = vmax.f32 %v936, %v937
        %v939 = vrot.slane %v938, 2
        %v940 = vmax.f32 %v938, %v939
        %v941 = vrot.slane %v940, 1
        %v942 = vmax.f32 %v940, %v941
        %v943 = vmax.f32 %v921, %v942
        %v944 = vsub.f32 %v921, %v943
        %v945 = vmul.f32 %v944, 1.442695
        %v946 = vpow.pop %v945
        %v948 = vlaneseq
        %v949 = vshrl.u32 %v948, 7
        %v950 = vsub.s32 0, %v949
        %v951 = vrot.slane %v943, %v950
        %v953 = vsub.f32 %v843, %v951
        %v954 = vsub.f32 %v848, %v951
        %v955 = vsub.f32 %v853, %v951
        %v956 = vsub.f32 %v858, %v951
        %v957 = vsub.f32 %v863, %v951
        %v958 = vsub.f32 %v868, %v951
        %v959 = vsub.f32 %v873, %v951
        %v960 = vsub.f32 %v878, %v951
        %v961 = vsub.f32 %v883, %v951
        %v962 = vsub.f32 %v888, %v951
        %v963 = vsub.f32 %v893, %v951
        %v964 = vsub.f32 %v898, %v951
        %v965 = vsub.f32 %v903, %v951
        %v966 = vsub.f32 %v908, %v951
        %v967 = vsub.f32 %v913, %v951
        %v968 = vsub.f32 %v918, %v951
        %v969 = vmul.f32 %v953, 1.442695
        %v970 = vpow.pop %v969
        %v971 = vmul.f32 %v954, 1.442695
        %v972 = vpow.pop %v971
        %v973 = vmul.f32 %v955, 1.442695
        %v974 = vpow.pop %v973
        %v975 = vmul.f32 %v956, 1.442695
        %v976 = vpow.pop %v975
        %v977 = vmul.f32 %v957, 1.442695
        %v978 = vpow.pop %v977
        %v979 = vmul.f32 %v958, 1.442695
        %v980 = vpow.pop %v979
        %v981 = vmul.f32 %v959, 1.442695
        %v982 = vpow.pop %v981
        %v983 = vmul.f32 %v960, 1.442695
        %v984 = vpow.pop %v983
        %v985 = vmul.f32 %v961, 1.442695
        %v986 = vpow.pop %v985
        %v987 = vmul.f32 %v962, 1.442695
        %v988 = vpow.pop %v987
        %v989 = vmul.f32 %v963, 1.442695
        %v990 = vpow.pop %v989
        %v991 = vmul.f32 %v964, 1.442695
        %v992 = vpow.pop %v991
        %v993 = vmul.f32 %v965, 1.442695
        %v994 = vpow.pop %v993
        %v995 = vmul.f32 %v966, 1.442695
        %v996 = vpow.pop %v995
        %v997 = vmul.f32 %v967, 1.442695
        %v998 = vpow.pop %v997
        %v999 = vmul.f32 %v968, 1.442695
        %v1000 = vpow.pop %v999
        %v1001 = vld [vmem:[#allocation4] sm:$0x1]
        %v1002 = vmul.f32 %v946, %v1001
        %v1003 = vadd.f32 %v970, %v972
        %v1004 = vadd.f32 %v1003, %v974
        %v1005 = vadd.f32 %v1004, %v976
        %v1006 = vadd.f32 %v1005, %v978
        %v1007 = vadd.f32 %v1006, %v980
        %v1008 = vadd.f32 %v1007, %v982
        %v1009 = vadd.f32 %v1008, %v984
        %v1010 = vadd.f32 %v1009, %v986
        %v1011 = vadd.f32 %v1010, %v988
        %v1012 = vadd.f32 %v1011, %v990
        %v1013 = vadd.f32 %v1012, %v992
        %v1014 = vadd.f32 %v1013, %v994
        %v1015 = vadd.f32 %v1014, %v996
        %v1016 = vadd.f32 %v1015, %v998
        %v1017 = vadd.f32 %v1016, %v1000
        %v1018 = vrot.slane %v1017, 4
        %v1019 = vadd.f32 %v1017, %v1018
        %v1020 = vrot.slane %v1019, 2
        %v1021 = vadd.f32 %v1019, %v1020
        %v1022 = vrot.slane %v1021, 1
        %v1023 = vadd.f32 %v1021, %v1022
        %v1024 = vadd.f32 %v1002, %v1023
        %1025 = vst [vmem:[#allocation4] sm:$0x1] %v1024
        %v1026 = vld [vmem:[#allocation5] sm:$0xff]
        %v1027 = vld [vmem:[#allocation5 + $0x8] sm:$0xff]
        %v1029 = vlaneseq
        %v1030 = vshrl.u32 %v1029, 7
        %v1031 = vsub.s32 0, %v1030
        %v1032 = vrot.slane %v946, %v1031
        %v1034 = vmul.f32 %v1032, %v1026
        %v1035 = vmul.f32 %v1032, %v1027
        %v1036 = vpack.c.bf16 %v687, %v682
        %v1037 = vpack.c.bf16 %v972, %v970
        %v1038 = vpack.c.bf16 %v976, %v974
        %v1039 = vpack.c.bf16 %v980, %v978
        %v1040 = vpack.c.bf16 %v984, %v982
        %v1041 = vpack.c.bf16 %v988, %v986
        %v1042 = vpack.c.bf16 %v992, %v990
        %v1043 = vpack.c.bf16 %v996, %v994
        %v1044 = vpack.c.bf16 %v1000, %v998
        %1045 = vmatprep.subr.bf16.mxu0 0
        %1046 = vmatpush1.bf16.msra.mxu0 %v1037
        %1047 = vmatprep.subr.bf16.mxu0 0
        %1048 = vmatpush1.bf16.msra.mxu0 %v1038
        %1049 = vmatprep.subr.bf16.mxu0 0
        %1050 = vmatpush1.bf16.msra.mxu0 %v1039
        %1051 = vmatprep.subr.bf16.mxu0 0
        %1052 = vmatpush1.bf16.msra.mxu0 %v1040
        %1053 = vmatprep.subr.bf16.mxu0 0
        %1054 = vmatpush1.bf16.msra.mxu0 %v1041
        %1055 = vmatprep.subr.bf16.mxu0 0
        %1056 = vmatpush1.bf16.msra.mxu0 %v1042
        %1057 = vmatprep.subr.bf16.mxu0 0
        %1058 = vmatpush1.bf16.msra.mxu0 %v1043
        %1059 = vmatprep.subr.bf16.mxu0 0
        %1060 = vmatpush1.bf16.msra.mxu0 %v1044
        %1061 = vmatprep.subr.bf16.mxu0 0
        %1062 = vmatpush1.bf16.msra.mxu0 0
        %1063 = vmatprep.subr.bf16.mxu0 0
        %1064 = vmatpush1.bf16.msra.mxu0 0
        %1065 = vmatprep.subr.bf16.mxu0 0
        %1066 = vmatpush1.bf16.msra.mxu0 0
        %1067 = vmatprep.subr.bf16.mxu0 0
        %1068 = vmatpush1.bf16.msra.mxu0 0
        %1069 = vmatprep.subr.bf16.mxu0 0
        %1070 = vmatpush1.bf16.msra.mxu0 0
        %1071 = vmatprep.subr.bf16.mxu0 0
        %1072 = vmatpush1.bf16.msra.mxu0 0
        %1073 = vmatprep.subr.bf16.mxu0 0
        %1074 = vmatpush1.bf16.msra.mxu0 0
        %1075 = vmatprep.subr.bf16.mxu0 0
        %1076 = vmatpush1.bf16.msra.mxu0 0
        %1077 = vmatprep.mubr.bf16.mxu0 0
        %1078 = vmatmul.mubr.bf16.gmra.mrb[0].mxu0 %v1036
        %v1079 = vpop.f32.mrb[0].mxu0
        %v1080 = vadd.f32 0.0, %v1079
        %v1081 = vpop.f32.mrb[0].mxu0
        %v1082 = vpop.f32.mrb[0].mxu0
        %v1083 = vadd.f32 0.0, %v1082
        %v1084 = vpop.f32.mrb[0].mxu0
        %1085 = vdwg.mxu0
        %v1086 = vadd.f32 %v1034, %v1080
        %v1087 = vadd.f32 %v1035, %v1083
        %1088 = vst [vmem:[#allocation5] sm:$0xff] %v1086
        %1089 = vst [vmem:[#allocation5 + $0x8] sm:$0xff] %v1087
        %1090 = vst [vmem:[#allocation3] sm:$0x1] %v943
        %p1091 = scmp.eq.s32.totalorder %s37, 1
        // Predicated region
        $region69: #{tpu_custom_call.1} parent=55 // pred_check
          %p1092 = pneg %p1091
        $region70: #{tpu_custom_call.1} parent=55 // pred_check_branch
          %1094 = sbr.rel (%p1092) target = $region72
        $region71: #{tpu_custom_call.1} parent=55 // pred_region
          %s1095 = sld [smem:[#allocation6]]
          %v1096 = vld [vmem:[#allocation4] sm:$0x1]
          %v1097 = vrcp.pop %v1096
          %v1098 = vstv %s1095
          %v1099 = vmul.f32 %v1098, %v1097
          %v1100 = vld [vmem:[#allocation5] sm:$0xff]
          %v1101 = vld [vmem:[#allocation5 + $0x8] sm:$0xff]
          %v1103 = vlaneseq
          %v1104 = vshrl.u32 %v1103, 7
          %v1105 = vsub.s32 0, %v1104
          %v1106 = vrot.slane %v1099, %v1105
          %v1108 = vmul.f32 %v1100, %v1106
          %v1109 = vmul.f32 %v1101, %v1106
          %1110 = vst [vmem:[%s418] sm:$0xff] %v1108
          %1111 = vst [vmem:[%s418 + $0x8] sm:$0xff] %v1109
        $region72: #{tpu_custom_call.1} parent=55 // pred_fallthru
          _
        %s1112 = sand.u32 %s262, 1
        %s1113 = scalar_lea.sflag [#allocation9], %s1112
        %s1114 = sand.u32 %s262, 1
        %s1115 = smul.addr %s1114, 16
        %s1116 = scalar_lea.vmem [#allocation12], %s1115
        // Predicated region
        $region73: #{tpu_custom_call.1} parent=55 // pred_check
          %p1117 = pneg %p272
        $region74: #{tpu_custom_call.1} parent=55 // pred_check_branch
          %1119 = sbr.rel (%p1117) target = $region76
        $region75: #{tpu_custom_call.1} parent=55 // pred_region
          %s1121 = ssub.s32 256, 256
          %1122 = vsyncadd %s1113, %s1121
          %s1123 = smul.addr %s35, 4
          %s1124 = sadd.s32 %s36, %s1123
          %s1125 = smul.addr %s1124, 128
          %s1126 = scalar_lea.hbm %s9, %s1125
          %s1127 = sshll.u32 %s1116, 4
          %s1128 = int_to_ptr.vmem [resolvable:$true] %s1127
          %1133 = dma.vmem_to_hbm [thread:$0]  %s1128, 256, %s1126, %s1113, 128, 256, 8
        $region76: #{tpu_custom_call.1} parent=55 // pred_fallthru
          _
      $region56: #{tpu_custom_call.1} parent=5 // pred_fallthru
        _
      %p1134 = scmp.le.s32.totalorder 2, %s25
      // Predicated region
      $region77: #{tpu_custom_call.1} parent=5 // pred_check
        %p1135 = pneg %p1134
      $region78: #{tpu_custom_call.1} parent=5 // pred_check_branch
        %1137 = sbr.rel (%p1135) target = $region80
      $region79: #{tpu_custom_call.1} parent=5 // pred_region
        %s1138 = ssub.s32 %s25, 2
        // Predicated region
        $region81: #{tpu_custom_call.1} parent=79 // pred_check
          %p1139 = pneg %p278
        $region82: #{tpu_custom_call.1} parent=79 // pred_check_branch
          %1141 = sbr.rel (%p1139) target = $region84
        $region83: #{tpu_custom_call.1} parent=79 // pred_region
          %s1142 = sand.u32 %s263, 1
          %s1143 = scalar_lea.sflag [#allocation9], %s1142
          %s1144 = sand.u32 %s263, 1
          %s1145 = smul.addr %s1144, 16
          %s1146 = scalar_lea.vmem [#allocation12], %s1145
          %1147 = dma.done %s1143, 256
        $region84: #{tpu_custom_call.1} parent=79 // pred_fallthru
          _
      $region80: #{tpu_custom_call.1} parent=5 // pred_fallthru
        _
    $region6: #{tpu_custom_call.1} parent=1 // loop_footer
      %s29 = sadd.s32 1, %s25
    $region7: #{tpu_custom_call.1} parent=1 // loop_footer_branch
      %24 = sbr.rel target = $region3
    $region8: #{tpu_custom_call.1} parent=1 // loop_exit
      _
    %1148 = vsyncpa [#allocation8], 1
    %s1149 = scalar_lea.sflag [#allocation8], 1
    %1150 = vsyncpa %s1149, 1
    %1151 = vsyncpa [#allocation11], 1
    %s1152 = scalar_lea.sflag [#allocation11], 1
    %1153 = vsyncpa %s1152, 1
    %1154 = vsyncpa [#allocation9], 1
    %s1155 = scalar_lea.sflag [#allocation9], 1
    %1156 = vsyncpa %s1155, 1

</llo_original>
